<compile_context>
chip_gen: v7x
topology: tpu7x:2x2x1
jax: 0.10.0
libtpu: 0.0.40
codegen_flags: <defaults>
</compile_context>

<pallas_src>
import functools

import jax
import jax.numpy as jnp
import numpy as np
from jax import lax
from jax.experimental import pallas as pl
from jax.experimental.pallas import tpu as pltpu


def _round_up(x, m):
    return ((x + m - 1) // m) * m


def _focal_loss_kernel(x_ref, t_ref, nat_ref, o_ref, *, gamma, rows_last, mask_last):
    x = x_ref[...].astype(jnp.float32)        # (tm, C) logits (f32 in-register)
    t = t_ref[...]                            # (tm, 1) int32 target ids
    neg_at = nat_ref[...]                     # (tm, 1) f32, pre-gathered -alpha[target]

    # log_softmax over classes (dim=1, matching F.log_softmax on 2-D input) and the
    # target-logit gather, sharing the shifted logits.
    col = lax.broadcasted_iota(jnp.int32, x.shape, 1)
    row_max = jnp.max(x, axis=1, keepdims=True)
    shifted = x - row_max
    sum_exp = jnp.sum(jnp.exp(shifted), axis=1, keepdims=True)
    shifted_t = jnp.sum(jnp.where(col == t, shifted, 0.0), axis=1, keepdims=True)
    logpt = shifted_t - jnp.log(sum_exp)      # (tm, 1) unweighted log p_t
    pt = jnp.exp(logpt)                       # exact per-row exp (EUP), no vrcp

    one_minus_pt = 1.0 - pt
    if float(gamma) == int(gamma) and 0 <= int(gamma) <= 8:
        g = int(gamma)
        if g == 0:
            mod = None
        else:
            mod = one_minus_pt                # VALU multiplies, no pow
            for _ in range(g - 1):
                mod = mod * one_minus_pt
    else:
        # clamp so pow (= exp(gamma*log(x))) never sees a slightly-negative base
        mod = jnp.maximum(one_minus_pt, 0.0) ** jnp.float32(gamma)

    # loss = -1 * (1 - pt)^gamma * (alpha_t * logpt); the "-alpha_t" is prefolded.
    weighted = logpt * neg_at                 # (tm, 1)
    loss = weighted if mod is None else mod * weighted

    def _store(v):
        o_ref[...] = jnp.sum(v, keepdims=True).reshape(o_ref.shape)

    if mask_last:
        # Only the tile straddling N pays the (tm,1) iota/compare/where mask;
        # it also neutralises the undefined rows of the boundary-block read.
        is_last = pl.program_id(0) == pl.num_programs(0) - 1

        @pl.when(is_last)
        def _():
            row = lax.broadcasted_iota(jnp.int32, loss.shape, 0)
            _store(jnp.where(row < rows_last, loss, 0.0))

        @pl.when(jnp.logical_not(is_last))
        def _():
            _store(loss)
    else:
        _store(loss)


def focal_loss(logits, target, alpha=None, *, gamma=2.0, size_average=True, tm=8192):
    """Pallas focal loss.

    logits: [N, C] (or [N, C, *spatial], reshaped like the torch module)
    target: [N] (or [N, *spatial]) integer class ids
    alpha : None | float (binary [a, 1-a]) | list/array of length C
    """
    if logits.ndim > 2:
        # (N, C, *spatial) -> (N*spatial, C), exactly like the torch forward.
        # TODO(synk): block the native (N, C, spatial) layout in-kernel (classes on
        # sublanes) to avoid this extra HBM copy for segmentation-style inputs.
        n0, c0 = logits.shape[0], logits.shape[1]
        logits = jnp.transpose(logits.reshape(n0, c0, -1), (0, 2, 1)).reshape(-1, c0)
    target_flat = target.reshape(-1).astype(jnp.int32)
    n, c = logits.shape

    # alpha handling mirrors FocalLoss.__init__; the per-row alpha gather is hoisted
    # to the wrapper (4 B/row, negligible vs 4*C B/row of logits) with -1 folded in.
    if alpha is None:
        neg_at = jnp.full((n, 1), -1.0, jnp.float32)
    else:
        if isinstance(alpha, (float, int)) and not isinstance(alpha, bool):
            alpha_arr = jnp.array([float(alpha), 1.0 - float(alpha)], jnp.float32)
        else:
            alpha_arr = jnp.asarray(alpha, jnp.float32).reshape(-1)
            assert alpha_arr.shape[0] == c, "alpha must have one weight per class"
        neg_at = (-alpha_arr)[target_flat].reshape(n, 1).astype(jnp.float32)
    target2d = target_flat.reshape(n, 1)

    # --- generation-aware tile sizing --------------------------------------
    vmem_bytes = 64 << 20                      # conservative fallback (v7x per-core VMEM)
    try:
        vmem_bytes = int(pltpu.get_tpu_info().vmem_capacity_bytes)
    except Exception:
        pass
    c_padded = _round_up(max(c, 1), 128)
    # Per logits buffer budget (double-buffered + f32 temporaries must all fit the
    # explicit vmem limit below): ~8 MiB on 128 MiB parts, ~4 MiB on 64 MiB parts.
    per_buffer = max(1 << 20, min(vmem_bytes // 16, 6 << 20))
    max_rows = max(8, per_buffer // (c_padded * 4))
    tm_eff = max(8, (min(int(tm), max_rows, _round_up(n, 8)) // 8) * 8)

    n_tiles = int(pl.cdiv(n, tm_eff))
    rows_last = n - (n_tiles - 1) * tm_eff
    mask_last = (n % tm_eff) != 0

    kernel = functools.partial(
        _focal_loss_kernel,
        gamma=float(gamma),
        rows_last=rows_last,
        mask_last=mask_last,
    )

    partials = pl.pallas_call(
        kernel,
        out_shape=jax.ShapeDtypeStruct((n_tiles, 1, 1), jnp.float32),
        grid_spec=pltpu.PrefetchScalarGridSpec(
            num_scalar_prefetch=0,
            grid=(n_tiles,),
            in_specs=[
                pl.BlockSpec((tm_eff, c), lambda i: (i, 0)),   # logits
                pl.BlockSpec((tm_eff, 1), lambda i: (i, 0)),   # targets
                pl.BlockSpec((tm_eff, 1), lambda i: (i, 0)),   # -alpha[target]
            ],
            out_specs=pl.BlockSpec((1, 1, 1), lambda i: (i, 0, 0)),  # per-tile sum
        ),
        compiler_params=pltpu.CompilerParams(
            dimension_semantics=("parallel",),
            vmem_limit_bytes=int(min(vmem_bytes * 3 // 4, 48 << 20)),
        ),
    )(logits, target2d, neg_at)

    total = jnp.sum(partials)
    if size_average:
        total = total / jnp.float32(n)
    return total


def _focal_loss_ref(logits, target, alpha, *, gamma, size_average):
    # pure-JAX reference mirroring the PyTorch forward
    if logits.ndim > 2:
        n0, c0 = logits.shape[0], logits.shape[1]
        logits = jnp.transpose(logits.reshape(n0, c0, -1), (0, 2, 1)).reshape(-1, c0)
    target = target.reshape(-1)
    logp = jax.nn.log_softmax(logits.astype(jnp.float32), axis=1)
    logpt = jnp.take_along_axis(logp, target[:, None], axis=1)[:, 0]
    pt = jnp.exp(logpt)
    if alpha is not None:
        if isinstance(alpha, (float, int)) and not isinstance(alpha, bool):
            alpha = jnp.array([float(alpha), 1.0 - float(alpha)], jnp.float32)
        at = jnp.asarray(alpha, jnp.float32)[target]
        logpt = logpt * at
    loss = -1.0 * (1.0 - pt) ** gamma * logpt
    return loss.mean() if size_average else loss.sum()


if __name__ == "__main__":
    key = jax.random.PRNGKey(0)
    k1, k2, k3, k4, k5, k6, k7, k8 = jax.random.split(key, 8)

    # Case 1: BERT-classifier-style 2-D logits, N not a multiple of the row tile
    # (exercises the masked boundary-block path), per-class alpha, integer gamma.
    N, C = 19, 32
    alpha_list = np.linspace(0.1, 1.0, C).astype(np.float32)
    logits = jax.random.normal(k1, (N, C), dtype=jnp.float32)
    target = jax.random.randint(k2, (N,), 0, C, dtype=jnp.int32)
    out1 = jax.block_until_ready(
        focal_loss(logits, target, alpha_list, gamma=2.0, size_average=True))
    ref1 = _focal_loss_ref(logits, target, alpha_list, gamma=2.0, size_average=True)
    np.testing.assert_allclose(float(out1), float(ref1), rtol=5e-3, atol=5e-3)

    # Case 2: >2-D logits (the view/transpose path), no alpha, non-integer gamma
    # (clamped pow path), sum reduction.
    B, C2, H, W = 2, 4, 5, 5
    logits4d = jax.random.normal(k3, (B, C2, H, W), dtype=jnp.float32)
    target3d = jax.random.randint(k4, (B, H, W), 0, C2, dtype=jnp.int32)
    out2 = jax.block_until_ready(
        focal_loss(logits4d, target3d, None, gamma=1.5, size_average=False))
    ref2 = _focal_loss_ref(logits4d, target3d, None, gamma=1.5, size_average=False)
    np.testing.assert_allclose(float(out2), float(ref2), rtol=5e-3, atol=5e-3)

    # Case 3: multiple row tiles with a ragged tail (mask gated to last tile only,
    # no wrapper pad / no extra HBM copy).
    N3, C3 = 600, 16
    logits3 = jax.random.normal(k5, (N3, C3), dtype=jnp.float32)
    target3 = jax.random.randint(k6, (N3,), 0, C3, dtype=jnp.int32)
    out3 = jax.block_until_ready(
        focal_loss(logits3, target3, None, gamma=2.0, size_average=True, tm=256))
    ref3 = _focal_loss_ref(logits3, target3, None, gamma=2.0, size_average=True)
    np.testing.assert_allclose(float(out3), float(ref3), rtol=5e-3, atol=5e-3)

    # Case 4: bf16 logits, binary float alpha, evenly-divided tiles (no tail mask).
    N4, C4 = 512, 2
    logits4 = jax.random.normal(k7, (N4, C4), dtype=jnp.bfloat16)
    target4 = jax.random.randint(k8, (N4,), 0, C4, dtype=jnp.int32)
    out4 = jax.block_until_ready(
        focal_loss(logits4, target4, 0.25, gamma=2.0, size_average=True, tm=128))
    ref4 = _focal_loss_ref(logits4, target4, 0.25, gamma=2.0, size_average=True)
    np.testing.assert_allclose(float(out4), float(ref4), rtol=1e-2, atol=1e-2)

    print("KERNEL_OK")
</pallas_src>

<mosaic_0001>
module attributes {stable_mosaic.version = 11 : i64} {
  func.func @_focal_loss_kernel(%arg0: i32, %arg1: memref<24x32xf32, #tpu.memory_space<vmem>>, %arg2: memref<24x1xi32, #tpu.memory_space<vmem>>, %arg3: memref<24x1xf32, #tpu.memory_space<vmem>>, %arg4: memref<1x1x1xf32, #tpu.memory_space<vmem>>) attributes {dimension_semantics = [#tpu.dimension_semantics<parallel>], iteration_bounds = array<i64: 1>, scalar_prefetch = 0 : i64, scratch_operands = 0 : i64, tpu.core_type = #tpu.core_type<tc>, window_params = [{transform_indices = @transform_0, window_bounds = array<i64: 24, 32>}, {transform_indices = @transform_1, window_bounds = array<i64: 24, 1>}, {transform_indices = @transform_2, window_bounds = array<i64: 24, 1>}, {transform_indices = @transform_3, window_bounds = array<i64: 1, 1, 1>}]} {
    %c0 = arith.constant 0 : index
    %c0_0 = arith.constant 0 : index
    %0 = vector.load %arg1[%c0, %c0_0] : memref<24x32xf32, #tpu.memory_space<vmem>>, vector<24x32xf32>
    %c0_1 = arith.constant 0 : index
    %c0_2 = arith.constant 0 : index
    %1 = vector.load %arg2[%c0_1, %c0_2] : memref<24x1xi32, #tpu.memory_space<vmem>>, vector<24x1xi32>
    %c0_3 = arith.constant 0 : index
    %c0_4 = arith.constant 0 : index
    %2 = vector.load %arg3[%c0_3, %c0_4] : memref<24x1xf32, #tpu.memory_space<vmem>>, vector<24x1xf32>
    %3 = tpu.iota {dimensions = array<i32: 1>} : vector<24x32xi32>
    %cst = arith.constant dense<0xFF800000> : vector<24xf32>
    %4 = vector.multi_reduction <maximumf>, %0, %cst [1] : vector<24x32xf32> to vector<24xf32>
    %5 = vector.shape_cast %4 : vector<24xf32> to vector<24x1xf32>
    %6 = vector.broadcast %5 : vector<24x1xf32> to vector<24x32xf32>
    %7 = arith.subf %0, %6 : vector<24x32xf32>
    %8 = math.exp %7 : vector<24x32xf32>
    %cst_5 = arith.constant dense<0.000000e+00> : vector<24xf32>
    %9 = vector.multi_reduction <add>, %8, %cst_5 [1] : vector<24x32xf32> to vector<24xf32>
    %10 = vector.shape_cast %9 : vector<24xf32> to vector<24x1xf32>
    %11 = vector.broadcast %1 : vector<24x1xi32> to vector<24x32xi32>
    %12 = arith.cmpi eq, %3, %11 : vector<24x32xi32>
    %cst_6 = arith.constant 0.000000e+00 : f32
    %13 = vector.broadcast %cst_6 : f32 to vector<24x32xf32>
    %14 = arith.select %12, %7, %13 : vector<24x32xi1>, vector<24x32xf32>
    %cst_7 = arith.constant dense<0.000000e+00> : vector<24xf32>
    %15 = vector.multi_reduction <add>, %14, %cst_7 [1] : vector<24x32xf32> to vector<24xf32>
    %16 = vector.shape_cast %15 : vector<24xf32> to vector<24x1xf32>
    %17 = math.log %10 : vector<24x1xf32>
    %18 = arith.subf %16, %17 : vector<24x1xf32>
    %19 = math.exp %18 : vector<24x1xf32>
    %cst_8 = arith.constant 1.000000e+00 : f32
    %20 = vector.broadcast %cst_8 : f32 to vector<24x1xf32>
    %21 = arith.subf %20, %19 : vector<24x1xf32>
    %22 = arith.mulf %21, %21 : vector<24x1xf32>
    %23 = arith.mulf %18, %2 : vector<24x1xf32>
    %24 = arith.mulf %22, %23 : vector<24x1xf32>
    %c0_i32 = arith.constant 0 : i32
    %25 = arith.cmpi eq, %arg0, %c0_i32 : i32
    %26 = arith.extui %25 : i1 to i32
    %c0_i32_9 = arith.constant 0 : i32
    %27 = arith.cmpi ne, %26, %c0_i32_9 : i32
    scf.if %27 {
      %31 = tpu.iota {dimensions = array<i32: 0>} : vector<24x1xi32>
      %c19_i32 = arith.constant 19 : i32
      %32 = vector.broadcast %c19_i32 : i32 to vector<24x1xi32>
      %33 = arith.cmpi slt, %31, %32 : vector<24x1xi32>
      %cst_11 = arith.constant 0.000000e+00 : f32
      %34 = vector.broadcast %cst_11 : f32 to vector<24x1xf32>
      %35 = arith.select %33, %24, %34 : vector<24x1xi1>, vector<24x1xf32>
      %36 = vector.shape_cast %35 : vector<24x1xf32> to vector<1x24x1xf32>
      %cst_12 = arith.constant dense<0.000000e+00> : vector<1xf32>
      %37 = vector.multi_reduction <add>, %36, %cst_12 [1, 2] : vector<1x24x1xf32> to vector<1xf32>
      %38 = vector.shape_cast %37 : vector<1xf32> to vector<1x1x1xf32>
      %39 = vector.extract %38[0, 0, 0] : f32 from vector<1x1x1xf32>
      %40 = vector.broadcast %39 : f32 to vector<1x1xf32>
      %41 = vector.shape_cast %40 : vector<1x1xf32> to vector<1x1x1xf32>
      %c0_13 = arith.constant 0 : index
      %c0_14 = arith.constant 0 : index
      %c0_15 = arith.constant 0 : index
      %42 = vector.load %arg4[%c0_13, %c0_14, %c0_15] : memref<1x1x1xf32, #tpu.memory_space<vmem>>, vector<1x1x1xf32>
      tpu.vector_store %arg4[%c0_13, %c0_14, %c0_15], %41 {strides = array<i32>} : memref<1x1x1xf32, #tpu.memory_space<vmem>>, vector<1x1x1xf32>,
    } else {
    }
    %true = arith.constant true
    %28 = arith.xori %25, %true : i1
    %29 = arith.extui %28 : i1 to i32
    %c0_i32_10 = arith.constant 0 : i32
    %30 = arith.cmpi ne, %29, %c0_i32_10 : i32
    scf.if %30 {
      %31 = vector.shape_cast %24 : vector<24x1xf32> to vector<1x24x1xf32>
      %cst_11 = arith.constant dense<0.000000e+00> : vector<1xf32>
      %32 = vector.multi_reduction <add>, %31, %cst_11 [1, 2] : vector<1x24x1xf32> to vector<1xf32>
      %33 = vector.shape_cast %32 : vector<1xf32> to vector<1x1x1xf32>
      %34 = vector.extract %33[0, 0, 0] : f32 from vector<1x1x1xf32>
      %35 = vector.broadcast %34 : f32 to vector<1x1xf32>
      %36 = vector.shape_cast %35 : vector<1x1xf32> to vector<1x1x1xf32>
      %c0_12 = arith.constant 0 : index
      %c0_13 = arith.constant 0 : index
      %c0_14 = arith.constant 0 : index
      %37 = vector.load %arg4[%c0_12, %c0_13, %c0_14] : memref<1x1x1xf32, #tpu.memory_space<vmem>>, vector<1x1x1xf32>
      tpu.vector_store %arg4[%c0_12, %c0_13, %c0_14], %36 {strides = array<i32>} : memref<1x1x1xf32, #tpu.memory_space<vmem>>, vector<1x1x1xf32>,
    } else {
    }
    return
  }
  func.func @transform_0(%arg0: i32) -> (i32, i32) {
    %c0_i32 = arith.constant 0 : i32
    %c0_i32_0 = arith.constant 0 : i32
    return %arg0, %c0_i32 : i32, i32
  }
  func.func @transform_1(%arg0: i32) -> (i32, i32) {
    %c0_i32 = arith.constant 0 : i32
    %c0_i32_0 = arith.constant 0 : i32
    return %arg0, %c0_i32 : i32, i32
  }
  func.func @transform_2(%arg0: i32) -> (i32, i32) {
    %c0_i32 = arith.constant 0 : i32
    %c0_i32_0 = arith.constant 0 : i32
    return %arg0, %c0_i32 : i32, i32
  }
  func.func @transform_3(%arg0: i32) -> (i32, i32, i32) {
    %c0_i32 = arith.constant 0 : i32
    %c0_i32_0 = arith.constant 0 : i32
    %c0_i32_1 = arith.constant 0 : i32
    return %arg0, %c0_i32, %c0_i32_0 : i32, i32, i32
  }
}

</mosaic_0001>

<llo_original>
// kernel: tpu_custom_call.1
$region0: #{tpu_custom_call.1}
  #allocation0 [shape = 'u32[]', space=smem, size = 0x4, offset = 0x4, fixed_abs, tag = 'smem constant byte address 0x4 - core index']
  #allocation1 [shape = 'u32[144,128]{1,0:T(1,128)}', space=vmem, size = 0x12000, scoped, tag = 'internal scratch']
  %s0 = inlined_call_operand.vmem [shape: f32[19,32], index: 0, kind: input, shape index: {}]
  %s1 = inlined_call_operand.vmem [shape: s32[19,1], index: 1, kind: input, shape index: {}]
  %s2 = inlined_call_operand.vmem [shape: f32[19,1], index: 2, kind: input, shape index: {}]
  %s3 = inlined_call_operand.hbm [shape: f32[1,1,1], index: 3, kind: output, shape index: {}]
  %s4 = sld [smem:[#allocation0]]
  $region30: #{tpu_custom_call.1} parent=0
    _
  %s6 = ssub.s32 1, %s4
  %s7 = scalar_select 0, %s6, %s4
  $region1: #{tpu_custom_call.1} parent=0
    #allocation2 [shape = 'u8[512]{0}', space=vmem, size = 0x400, scoped, tag = 'output window, operand 0, single buffered']
    #allocation3 [shape = 's32[1]{0}', space=sflag, size = 0x4, scoped, tag = 'scoped memory for tpu_custom_call.1']
    %8 = vsyncpa [#allocation3], 0
    // Predicated region
    $region2: #{tpu_custom_call.1} parent=1 // pred_check
      _
    $region3: #{tpu_custom_call.1} parent=1 // pred_check_branch
      %10 = sbr.rel (0) target = $region5
    $region4: #{tpu_custom_call.1} parent=1 // pred_region
      _
    $region5: #{tpu_custom_call.1} parent=1 // pred_fallthru
      _
    // Predicated region
    $region6: #{tpu_custom_call.1} parent=1 // pred_check
      _
    $region7: #{tpu_custom_call.1} parent=1 // pred_check_branch
      %12 = sbr.rel (0) target = $region9
    $region8: #{tpu_custom_call.1} parent=1 // pred_region
      _
    $region9: #{tpu_custom_call.1} parent=1 // pred_fallthru
      _
    // Predicated region
    $region10: #{tpu_custom_call.1} parent=1 // pred_check
      _
    $region11: #{tpu_custom_call.1} parent=1 // pred_check_branch
      %14 = sbr.rel (0) target = $region13
    $region12: #{tpu_custom_call.1} parent=1 // pred_region
      _
    $region13: #{tpu_custom_call.1} parent=1 // pred_fallthru
      _
    %v15 = vld [vmem:[%s0] sm:$0xff]
    %v16 = vld [vmem:[%s0 + $0x8] sm:$0xff]
    %v17 = vld [vmem:[%s0 + $0x10] sm:$0xff]
    %v18 = vld [vmem:[%s1] sm:$0xff]
    %v19 = vld [vmem:[%s1 + $0x8] sm:$0xff]
    %v20 = vld [vmem:[%s1 + $0x10] sm:$0xff]
    %v21 = vld [vmem:[%s2] sm:$0xff]
    %v22 = vld [vmem:[%s2 + $0x8] sm:$0xff]
    %v23 = vld [vmem:[%s2 + $0x10] sm:$0xff]
    %v24 = vlaneseq
    %v25 = vand.u32 %v24, 127
    %vm26 = vcmask 261120
    %v27 = vsel %vm26, %v15, -inf
    %28 = vmax.xlane.f32.xlu0 %v27
    %v29 = vpop.xlane.xlu0 %28
    %v30 = vsel %vm26, %v16, -inf
    %31 = vmax.xlane.f32.xlu0 %v30
    %v32 = vpop.xlane.xlu0 %31
    %v33 = vsel %vm26, %v17, -inf
    %34 = vmax.xlane.f32.xlu0 %v33
    %v35 = vpop.xlane.xlu0 %34
    %v36 = vsub.f32 %v15, %v29
    %v37 = vsub.f32 %v16, %v32
    %v38 = vsub.f32 %v17, %v35
    %v39 = vmul.f32 %v36, 1.442695
    %v40 = vpow.pop %v39
    %v41 = vmul.f32 %v37, 1.442695
    %v42 = vpow.pop %v41
    %v43 = vmul.f32 %v38, 1.442695
    %v44 = vpow.pop %v43
    %v45 = vsel %vm26, %v40, 0.0
    %46 = vadd.xlane.f32.xlu0 %v45
    %v47 = vpop.xlane.xlu0 %46
    %v48 = vsel %vm26, %v42, 0.0
    %49 = vadd.xlane.f32.xlu0 %v48
    %v50 = vpop.xlane.xlu0 %49
    %v51 = vsel %vm26, %v44, 0.0
    %52 = vadd.xlane.f32.xlu0 %v51
    %v53 = vpop.xlane.xlu0 %52
    %54 = vset.pattern.permute.xlu0 0
    %55 = vperm.xlu0 %54, %v18
    %v56 = vpop.permute.xlu0 %55
    %57 = vset.pattern.permute.xlu0 0
    %58 = vperm.xlu0 %57, %v19
    %v59 = vpop.permute.xlu0 %58
    %60 = vset.pattern.permute.xlu0 0
    %61 = vperm.xlu0 %60, %v20
    %v62 = vpop.permute.xlu0 %61
    %vm63 = vcmp.eq.s32.totalorder %v25, %v56
    %vm64 = vcmp.eq.s32.totalorder %v25, %v59
    %vm65 = vcmp.eq.s32.totalorder %v25, %v62
    %v66 = vsel %vm63, %v36, 0.0
    %v67 = vsel %vm64, %v37, 0.0
    %v68 = vsel %vm65, %v38, 0.0
    %v69 = vsel %vm26, %v66, 0.0
    %70 = vadd.xlane.f32.xlu0 %v69
    %v71 = vpop.xlane.xlu0 %70
    %v72 = vsel %vm26, %v67, 0.0
    %73 = vadd.xlane.f32.xlu0 %v72
    %v74 = vpop.xlane.xlu0 %73
    %v75 = vsel %vm26, %v68, 0.0
    %76 = vadd.xlane.f32.xlu0 %v75
    %v77 = vpop.xlane.xlu0 %76
    %v78 = vlog2.pop %v47
    %v79 = vmul.f32 %v78, 0.6931472
    %v80 = vlog2.pop %v50
    %v81 = vmul.f32 %v80, 0.6931472
    %v82 = vlog2.pop %v53
    %v83 = vmul.f32 %v82, 0.6931472
    %v84 = vsub.f32 %v71, %v79
    %v85 = vsub.f32 %v74, %v81
    %v86 = vsub.f32 %v77, %v83
    %v87 = vmul.f32 %v84, 1.442695
    %v88 = vpow.pop %v87
    %v89 = vmul.f32 %v85, 1.442695
    %v90 = vpow.pop %v89
    %v91 = vmul.f32 %v86, 1.442695
    %v92 = vpow.pop %v91
    %v93 = vsub.f32 1.0, %v88
    %v94 = vsub.f32 1.0, %v90
    %v95 = vsub.f32 1.0, %v92
    %v96 = vmul.f32 %v93, %v93
    %v97 = vmul.f32 %v94, %v94
    %v98 = vmul.f32 %v95, %v95
    %v99 = vmul.f32 %v84, %v21
    %v100 = vmul.f32 %v85, %v22
    %v101 = vmul.f32 %v86, %v23
    %v102 = vmul.f32 %v96, %v99
    %v103 = vmul.f32 %v97, %v100
    %v104 = vmul.f32 %v98, %v101
    %p105 = scmp.eq.s32.totalorder 0, 0
    // Predicated region
    $region14: #{tpu_custom_call.1} parent=1 // pred_check
      %p106 = pneg %p105
    $region15: #{tpu_custom_call.1} parent=1 // pred_check_branch
      %108 = sbr.rel (%p106) target = $region17
    $region16: #{tpu_custom_call.1} parent=1 // pred_region
      %v109 = vlaneseq
      %v110 = vshrl.u32 %v109, 7
      %v111 = vadd.s32 %v110, 8
      %v112 = vadd.s32 %v110, 16
      %vm113 = vcmp.lt.s32.totalorder %v110, 19
      %vm114 = vcmp.lt.s32.totalorder %v111, 19
      %vm115 = vcmp.lt.s32.totalorder %v112, 19
      %v116 = vsel %vm113, %v102, 0.0
      %v117 = vsel %vm114, %v103, 0.0
      %v118 = vsel %vm115, %v104, 0.0
      %vm119 = vcmask 7168
      %v120 = vsel %vm119, %v116, 0.0
      %v121 = vsel %vm119, %v117, 0.0
      %v122 = vadd.f32 %v120, %v121
      %v123 = vsel %vm119, %v118, 0.0
      %v124 = vadd.f32 %v122, %v123
      %125 = vadd.xlane.f32.xlu0 %v124
      %v126 = vpop.xlane.xlu0 %125
      %v127 = vrot.slane %v126, 4
      %v128 = vadd.f32 %v126, %v127
      %v129 = vrot.slane %v128, 2
      %v130 = vadd.f32 %v128, %v129
      %v131 = vrot.slane %v130, 1
      %v132 = vadd.f32 %v130, %v131
      %s133 = vtos %v132
      %v134 = vstv %s133
      %vm135 = vcmask 0
      %136 = vst.msk [vmem:[#allocation2] sm:$0x1] %vm135, %v134
    $region17: #{tpu_custom_call.1} parent=1 // pred_fallthru
      _
    %p137 = scmp.ne.s32.totalorder 0, 0
    // Predicated region
    $region18: #{tpu_custom_call.1} parent=1 // pred_check
      %p138 = pneg %p137
    $region19: #{tpu_custom_call.1} parent=1 // pred_check_branch
      %140 = sbr.rel (%p138) target = $region21
    $region20: #{tpu_custom_call.1} parent=1 // pred_region
      %vm141 = vcmask 7168
      %v142 = vsel %vm141, %v102, 0.0
      %v143 = vsel %vm141, %v103, 0.0
      %v144 = vadd.f32 %v142, %v143
      %v145 = vsel %vm141, %v104, 0.0
      %v146 = vadd.f32 %v144, %v145
      %147 = vadd.xlane.f32.xlu0 %v146
      %v148 = vpop.xlane.xlu0 %147
      %v149 = vrot.slane %v148, 4
      %v150 = vadd.f32 %v148, %v149
      %v151 = vrot.slane %v150, 2
      %v152 = vadd.f32 %v150, %v151
      %v153 = vrot.slane %v152, 1
      %v154 = vadd.f32 %v152, %v153
      %s155 = vtos %v154
      %v156 = vstv %s155
      %vm157 = vcmask 0
      %158 = vst.msk [vmem:[#allocation2] sm:$0x1] %vm157, %v156
    $region21: #{tpu_custom_call.1} parent=1 // pred_fallthru
      _
    // Predicated region
    $region22: #{tpu_custom_call.1} parent=1 // pred_check
      _
    $region23: #{tpu_custom_call.1} parent=1 // pred_check_branch
      %160 = sbr.rel (0) target = $region25
    $region24: #{tpu_custom_call.1} parent=1 // pred_region
      %s162 = ssub.s32 16, 16
      %163 = vsyncadd [#allocation3], %s162
      %s165 = sshll.u32 [#allocation2], 4
      %s166 = int_to_ptr.vmem [resolvable:$true] %s165
      %168 = dma.vmem_to_hbm [thread:$0]  %s166, 16, %s3, [#allocation3]
    $region25: #{tpu_custom_call.1} parent=1 // pred_fallthru
      _
    // Predicated region
    $region26: #{tpu_custom_call.1} parent=1 // pred_check
      _
    $region27: #{tpu_custom_call.1} parent=1 // pred_check_branch
      %170 = sbr.rel (0) target = $region29
    $region28: #{tpu_custom_call.1} parent=1 // pred_region
      %171 = dma.done [#allocation3], 16
    $region29: #{tpu_custom_call.1} parent=1 // pred_fallthru
      _
    %172 = vsyncpa [#allocation3], 1

</llo_original>
